<compile_context>
chip_gen: v7x
topology: tpu7x:2x2x1
jax: 0.10.0
libtpu: 0.0.40
codegen_flags: <defaults>
</compile_context>

<pallas_src>
import math

import jax
import jax.numpy as jnp
from jax.experimental import pallas as pl
from jax.experimental.pallas import tpu as pltpu


def _drop_path_kernel(scale_ref, x_ref, o_ref):
    """One grid step: scale a (tb, tf) tile of x by its per-row scale (tb, 1)."""
    x = x_ref[...].astype(jnp.float32)
    o_ref[...] = (x * scale_ref[...]).astype(o_ref.dtype)


def _round_tile(extent, unit, cap):
    """Full extent if it fits under `cap`, else the largest multiple of `unit` <= cap."""
    if extent <= cap:
        return extent
    return max(unit, (cap // unit) * unit)


def drop_path_forward(x, drop_prob=0.0, *, training=False, key=None,
                      max_batch_tile=256, max_feature_tile=2048):
    """DropPath forward.  x: (batch, ...) -> same shape."""
    if drop_prob == 0.0 or not training:
        # PyTorch returns x untouched in eval mode / p == 0 — pure identity.
        return x
    keep_prob = 1.0 - float(drop_prob)
    if key is None:
        key = jax.random.PRNGKey(0)

    batch = x.shape[0]
    features = math.prod(x.shape[1:]) if x.ndim > 1 else 1
    x2d = x.reshape(batch, features)  # lane axis = flattened per-sample feats

    # Per-sample keep mask (O(batch) work) drawn outside the kernel, then
    # folded with the 1/keep_prob scaling into a (batch, 1) f32 scale vector.
    mask = jax.random.bernoulli(key, p=keep_prob, shape=(batch,))
    scale = (mask.astype(jnp.float32) / keep_prob).reshape(batch, 1)

    # Tile sizes obeying the TPU (8, 128) block constraint:
    #   sublane (batch) tile : full batch if small, else a multiple of 8
    #   lane (feature) tile  : full extent if small, else a multiple of 128
    tb = _round_tile(batch, 8, max_batch_tile)
    tf = _round_tile(features, 128, max_feature_tile)
    grid = (pl.cdiv(batch, tb), pl.cdiv(features, tf))

    out2d = pl.pallas_call(
        _drop_path_kernel,
        out_shape=jax.ShapeDtypeStruct((batch, features), x.dtype),
        grid=grid,
        in_specs=[
            pl.BlockSpec((tb, 1), lambda i, j: (i, 0)),    # per-row scale
            pl.BlockSpec((tb, tf), lambda i, j: (i, j)),   # x tile
        ],
        out_specs=pl.BlockSpec((tb, tf), lambda i, j: (i, j)),
        compiler_params=pltpu.CompilerParams(
            # Pure elementwise: both grid axes are independent -> shard across
            # the two TensorCores on v7x; tiles are double-buffered so the
            # HBM<->VMEM DMAs hide behind the VPU multiply.
            dimension_semantics=("parallel", "parallel")),
    )(scale, x2d)

    return out2d.reshape(x.shape)


if __name__ == "__main__":
    key = jax.random.PRNGKey(0)
    xkey, mkey = jax.random.split(key)

    batch, seq, d_model = 16, 8, 64  # flattened features = 512 (4 * 128 lanes)
    x = jax.random.normal(xkey, (batch, seq, d_model), jnp.float32)

    drop_prob = 0.25
    keep_prob = 1.0 - drop_prob

    # Training-mode DropPath, tiled small so the grid is (2, 2) and per-row
    # mask broadcast across feature tiles is actually exercised.
    out = drop_path_forward(x, drop_prob, training=True, key=mkey,
                            max_batch_tile=8, max_feature_tile=256)
    out = jax.block_until_ready(out)
    assert out.shape == x.shape

    # Per-sample semantics: each sample is either dropped (all zeros) or kept
    # and scaled by 1/keep_prob — never anything in between.
    for b in range(batch):
        dropped = bool(jnp.allclose(out[b], 0.0))
        kept = bool(jnp.allclose(out[b], x[b] / keep_prob, atol=1e-5, rtol=1e-5))
        assert dropped or kept, f"sample {b} violates DropPath semantics"

    # Tiling invariance: a different tile size (one big block here) must give
    # the identical result, since the mask depends only on the key.
    out_big = drop_path_forward(x, drop_prob, training=True, key=mkey,
                                max_batch_tile=256, max_feature_tile=2048)
    out_big = jax.block_until_ready(out_big)
    assert jnp.allclose(out, out_big)

    # Eval mode / p == 0: identity, exactly as in PyTorch.
    assert jnp.array_equal(drop_path_forward(x, drop_prob, training=False), x)
    assert jnp.array_equal(drop_path_forward(x, 0.0, training=True), x)

    print("KERNEL_OK")
</pallas_src>

<mosaic_0001>
module attributes {stable_mosaic.version = 11 : i64} {
  func.func @_drop_path_kernel(%arg0: i32, %arg1: i32, %arg2: memref<8x1xf32, #tpu.memory_space<vmem>>, %arg3: memref<8x256xf32, #tpu.memory_space<vmem>>, %arg4: memref<8x256xf32, #tpu.memory_space<vmem>>) attributes {dimension_semantics = [#tpu.dimension_semantics<parallel>, #tpu.dimension_semantics<parallel>], iteration_bounds = array<i64: 2, 2>, scalar_prefetch = 0 : i64, scratch_operands = 0 : i64, tpu.core_type = #tpu.core_type<tc>, window_params = [{transform_indices = @transform_0, window_bounds = array<i64: 8, 1>}, {transform_indices = @transform_1, window_bounds = array<i64: 8, 256>}, {transform_indices = @transform_2, window_bounds = array<i64: 8, 256>}]} {
    %c0 = arith.constant 0 : index
    %c0_0 = arith.constant 0 : index
    %0 = vector.load %arg3[%c0, %c0_0] : memref<8x256xf32, #tpu.memory_space<vmem>>, vector<8x256xf32>
    %c0_1 = arith.constant 0 : index
    %c0_2 = arith.constant 0 : index
    %1 = vector.load %arg2[%c0_1, %c0_2] : memref<8x1xf32, #tpu.memory_space<vmem>>, vector<8x1xf32>
    %2 = vector.broadcast %1 : vector<8x1xf32> to vector<8x256xf32>
    %3 = arith.mulf %0, %2 : vector<8x256xf32>
    %c0_3 = arith.constant 0 : index
    %c0_4 = arith.constant 0 : index
    %4 = vector.load %arg4[%c0_3, %c0_4] : memref<8x256xf32, #tpu.memory_space<vmem>>, vector<8x256xf32>
    tpu.vector_store %arg4[%c0_3, %c0_4], %3 {strides = array<i32>} : memref<8x256xf32, #tpu.memory_space<vmem>>, vector<8x256xf32>,
    return
  }
  func.func @transform_0(%arg0: i32, %arg1: i32) -> (i32, i32) {
    %c0_i32 = arith.constant 0 : i32
    %c0_i32_0 = arith.constant 0 : i32
    return %arg0, %c0_i32 : i32, i32
  }
  func.func @transform_1(%arg0: i32, %arg1: i32) -> (i32, i32) {
    %c0_i32 = arith.constant 0 : i32
    return %arg0, %arg1 : i32, i32
  }
  func.func @transform_2(%arg0: i32, %arg1: i32) -> (i32, i32) {
    %c0_i32 = arith.constant 0 : i32
    return %arg0, %arg1 : i32, i32
  }
}

</mosaic_0001>

<llo_original>
// kernel: tpu_custom_call.1
$region0: #{tpu_custom_call.1}
  #allocation0 [shape = 'u32[]', space=smem, size = 0x4, offset = 0x4, fixed_abs, tag = 'smem constant byte address 0x4 - core index']
  #allocation1 [shape = 'u32[144,128]{1,0:T(1,128)}', space=vmem, size = 0x12000, scoped, tag = 'internal scratch']
  %s0 = inlined_call_operand.vmem [shape: f32[16,1], index: 0, kind: input, shape index: {}]
  %s1 = inlined_call_operand.hbm [shape: f32[16,512], index: 1, kind: input, shape index: {}]
  %s2 = inlined_call_operand.hbm [shape: f32[16,512], index: 2, kind: output, shape index: {}]
  %s3 = sld [smem:[#allocation0]]
  $region45: #{tpu_custom_call.1} parent=0
    _
  %s5 = ssub.s32 1, %s3
  %s6 = scalar_select 0, %s5, %s3
  $region1: #{tpu_custom_call.1} parent=0
    #allocation2 [shape = 'u8[16384]{0}', space=vmem, size = 0x4000, scoped, tag = 'input window, operand 1']
    #allocation3 [shape = 's32[2]{0}', space=sflag, size = 0x8, scoped, tag = 'scoped memory for tpu_custom_call.1']
    #allocation4 [shape = 's32[2]{0}', space=sflag, size = 0x8, scoped, tag = 'scoped memory for tpu_custom_call.1']
    #allocation5 [shape = 'u8[16384]{0}', space=vmem, size = 0x4000, scoped, tag = 'output window, operand 0']
    %7 = vsyncpa [#allocation3], 0
    %s8 = scalar_lea.sflag [#allocation3], 1
    %9 = vsyncpa %s8, 0
    %10 = vsyncpa [#allocation4], 0
    %s11 = scalar_lea.sflag [#allocation4], 1
    %12 = vsyncpa %s11, 0
    loop: start=0, step=1, limit=6
    $region2: #{tpu_custom_call.1} parent=1 // loop_pre_header
      _
    $region3: #{tpu_custom_call.1} parent=1 // loop_header
      %s14 = sphi 0, %s18
      %p15 = scmp.ge.s32.totalorder %s14, 6
      %s21 = sphi 0, %s33
      %s22 = sphi 0, %s29
      %s23 = sphi 0, %s21
      %s24 = sphi 0, %s22
      %s25 = sphi 0, %s23
      %s26 = sphi 0, %s24
      %s36 = sphi 0, %s38
      %s39 = sphi 0, %s36
      %s40 = sphi 0, %s39
      %s56 = sphi 0, %s40
      %s64 = sphi 0, %s66
      %s67 = sphi 0, %s64
      %s68 = sphi 0, %s67
      %s84 = sphi 0, %s68
      %s92 = sphi 0, %s94
      %s95 = sphi 0, %s92
      %s96 = sphi 0, %s95
      %s112 = sphi 0, %s96
    $region4: #{tpu_custom_call.1} parent=1 // loop_header_branch
      %17 = sbr.rel (%p15) target = $region8
    $region5: #{tpu_custom_call.1} parent=1 // loop_body
      %s19 = ssub.s32 %s14, 1
      %s20 = ssub.s32 %s14, 2
      %s27 = sadd.s32 1, %s22
      %p28 = scmp.ge.s32.totalorder %s27, 2
      %s29 = scalar_select %p28, 0, %s27
      %s30 = sadd.s32 1, %s21
      %s31 = scalar_select %p28, %s30, %s21
      %p32 = scmp.ge.s32.totalorder %s31, 2
      %s33 = scalar_select %p32, 0, %s31
      %s34 = ssub.s32 %s21, %s33
      %p35 = scmp.eq.s32.totalorder %s34, 0
      %s37 = sadd.s32 %s36, 1
      %s38 = scalar_select %p35, %s36, %s37
      %p41 = pneg %p35
      %p42 = scmp.eq.s32.totalorder %s14, 3
      %p43 = por %p41, %p42
      %p44 = scmp.ne.s32.totalorder %s36, %s39
      %p45 = scmp.eq.s32.totalorder %s14, 0
      %p46 = por %p44, %p45
      %p47 = scmp.ne.s32.totalorder %s36, %s39
      %p48 = scmp.eq.s32.totalorder %s19, 3
      %p49 = por %p47, %p48
      %p50 = scmp.ne.s32.totalorder %s39, %s40
      %p51 = scmp.eq.s32.totalorder %s19, 0
      %p52 = por %p50, %p51
      %p53 = scmp.ne.s32.totalorder %s39, %s40
      %p54 = scmp.eq.s32.totalorder %s20, 3
      %p55 = por %p53, %p54
      %p57 = scmp.ne.s32.totalorder %s40, %s56
      %p58 = scmp.eq.s32.totalorder %s20, 0
      %p59 = por %p57, %p58
      %s60 = ssub.s32 %s21, %s33
      %s61 = ssub.s32 %s22, %s29
      %s62 = sor.u32 %s60, %s61
      %p63 = scmp.eq.s32.totalorder %s62, 0
      %s65 = sadd.s32 %s64, 1
      %s66 = scalar_select %p63, %s64, %s65
      %p69 = pneg %p63
      %p70 = scmp.eq.s32.totalorder %s14, 3
      %p71 = por %p69, %p70
      %p72 = scmp.ne.s32.totalorder %s64, %s67
      %p73 = scmp.eq.s32.totalorder %s14, 0
      %p74 = por %p72, %p73
      %p75 = scmp.ne.s32.totalorder %s64, %s67
      %p76 = scmp.eq.s32.totalorder %s19, 3
      %p77 = por %p75, %p76
      %p78 = scmp.ne.s32.totalorder %s67, %s68
      %p79 = scmp.eq.s32.totalorder %s19, 0
      %p80 = por %p78, %p79
      %p81 = scmp.ne.s32.totalorder %s67, %s68
      %p82 = scmp.eq.s32.totalorder %s20, 3
      %p83 = por %p81, %p82
      %p85 = scmp.ne.s32.totalorder %s68, %s84
      %p86 = scmp.eq.s32.totalorder %s20, 0
      %p87 = por %p85, %p86
      %s88 = ssub.s32 %s21, %s33
      %s89 = ssub.s32 %s22, %s29
      %s90 = sor.u32 %s88, %s89
      %p91 = scmp.eq.s32.totalorder %s90, 0
      %s93 = sadd.s32 %s92, 1
      %s94 = scalar_select %p91, %s92, %s93
      %p97 = pneg %p91
      %p98 = scmp.eq.s32.totalorder %s14, 3
      %p99 = por %p97, %p98
      %p100 = scmp.ne.s32.totalorder %s92, %s95
      %p101 = scmp.eq.s32.totalorder %s14, 0
      %p102 = por %p100, %p101
      %p103 = scmp.ne.s32.totalorder %s92, %s95
      %p104 = scmp.eq.s32.totalorder %s19, 3
      %p105 = por %p103, %p104
      %p106 = scmp.ne.s32.totalorder %s95, %s96
      %p107 = scmp.eq.s32.totalorder %s19, 0
      %p108 = por %p106, %p107
      %p109 = scmp.ne.s32.totalorder %s95, %s96
      %p110 = scmp.eq.s32.totalorder %s20, 3
      %p111 = por %p109, %p110
      %p113 = scmp.ne.s32.totalorder %s96, %s112
      %p114 = scmp.eq.s32.totalorder %s20, 0
      %p115 = por %p113, %p114
      %p116 = scmp.le.s32.totalorder 1, %s14
      %p117 = scmp.lt.s32.totalorder %s14, 5
      %p118 = pnand %p116, %p117
      %p119 = pneg %p118
      // Predicated region
      $region9: #{tpu_custom_call.1} parent=5 // pred_check
        _
      $region10: #{tpu_custom_call.1} parent=5 // pred_check_branch
        %121 = sbr.rel (%p118) target = $region12
      $region11: #{tpu_custom_call.1} parent=5 // pred_region
        %s122 = ssub.s32 %s14, 1
      $region12: #{tpu_custom_call.1} parent=5 // pred_fallthru
        _
      %p123 = scmp.lt.s32.totalorder %s14, 4
      // Predicated region
      $region13: #{tpu_custom_call.1} parent=5 // pred_check
        %p124 = pneg %p123
      $region14: #{tpu_custom_call.1} parent=5 // pred_check_branch
        %126 = sbr.rel (%p124) target = $region16
      $region15: #{tpu_custom_call.1} parent=5 // pred_region
        // Predicated region
        $region17: #{tpu_custom_call.1} parent=15 // pred_check
          %p127 = pneg %p46
        $region18: #{tpu_custom_call.1} parent=15 // pred_check_branch
          %129 = sbr.rel (%p127) target = $region20
        $region19: #{tpu_custom_call.1} parent=15 // pred_region
          %p130 = scmp.lt.s32.totalorder %s21, 1
          %s131 = scalar_select %p130, %s21, 1
          %s132 = smul.addr %s131, 8
          %s133 = scalar_lea.vmem %s0, %s132
        $region20: #{tpu_custom_call.1} parent=15 // pred_fallthru
          _
        // Predicated region
        $region21: #{tpu_custom_call.1} parent=15 // pred_check
          %p134 = pneg %p74
        $region22: #{tpu_custom_call.1} parent=15 // pred_check_branch
          %136 = sbr.rel (%p134) target = $region24
        $region23: #{tpu_custom_call.1} parent=15 // pred_region
          %s137 = sand.u32 %s64, 1
          %s138 = scalar_lea.sflag [#allocation3], %s137
          %s139 = sand.u32 %s64, 1
          %s140 = smul.addr %s139, 16
          %s141 = scalar_lea.vmem [#allocation2], %s140
          %s142 = smul.u32 2, %s22
          %s144 = ssub.s32 256, 256
          %145 = vsyncadd %s138, %s144
          %s146 = smul.addr %s21, 4
          %s147 = sadd.s32 %s142, %s146
          %s148 = smul.addr %s147, 128
          %s149 = scalar_lea.hbm %s1, %s148
          %s151 = sshll.u32 %s141, 4
          %s152 = int_to_ptr.vmem [resolvable:$true] %s151
          %154 = dma.hbm_to_vmem [thread:$0]  %s149, 256, %s152, %s138
        $region24: #{tpu_custom_call.1} parent=15 // pred_fallthru
          _
      $region16: #{tpu_custom_call.1} parent=5 // pred_fallthru
        _
      %p155 = scmp.le.s32.totalorder 1, %s14
      %p156 = scmp.lt.s32.totalorder %s14, 5
      %p157 = pnand %p155, %p156
      %p158 = pneg %p157
      // Predicated region
      $region25: #{tpu_custom_call.1} parent=5 // pred_check
        _
      $region26: #{tpu_custom_call.1} parent=5 // pred_check_branch
        %160 = sbr.rel (%p157) target = $region28
      $region27: #{tpu_custom_call.1} parent=5 // pred_region
        %s161 = ssub.s32 %s14, 1
        %s162 = sand.u32 %s67, 1
        %s163 = scalar_lea.sflag [#allocation3], %s162
        %s164 = sand.u32 %s67, 1
        %s165 = smul.addr %s164, 16
        %s166 = scalar_lea.vmem [#allocation2], %s165
        // Predicated region
        $region29: #{tpu_custom_call.1} parent=27 // pred_check
          %p167 = pneg %p80
        $region30: #{tpu_custom_call.1} parent=27 // pred_check_branch
          %169 = sbr.rel (%p167) target = $region32
        $region31: #{tpu_custom_call.1} parent=27 // pred_region
          %170 = dma.done %s163, 256
        $region32: #{tpu_custom_call.1} parent=27 // pred_fallthru
          _
        %p171 = scmp.lt.s32.totalorder %s23, 1
        %s172 = scalar_select %p171, %s23, 1
        %s173 = smul.addr %s172, 8
        %s174 = scalar_lea.vmem %s0, %s173
        %p175 = pneg %p52
        %p176 = pneg %p49
        %s177 = sand.u32 %s67, 1
        %s178 = scalar_lea.sflag [#allocation3], %s177
        %s179 = sand.u32 %s67, 1
        %s180 = smul.addr %s179, 16
        %s181 = scalar_lea.vmem [#allocation2], %s180
        %p182 = pneg %p80
        %p183 = pneg %p77
        %p184 = pneg %p108
        %p185 = pneg %p105
        %s186 = sand.u32 %s95, 1
        %s187 = scalar_lea.sflag [#allocation4], %s186
        %s188 = sand.u32 %s95, 1
        %s189 = smul.addr %s188, 16
        %s190 = scalar_lea.vmem [#allocation5], %s189
        %p191 = scmp.lt.s32.totalorder %s23, 1
        %s192 = scalar_select %p191, %s23, 1
        %s193 = smul.addr %s192, 8
        %s194 = scalar_lea.vmem %s0, %s193
        %s195 = smul.u32 2, %s24
        %s196 = smul.u32 2, %s24
        %v197 = vld [vmem:[%s166] sm:$0xff]
        %v198 = vld [vmem:[%s166 + $0x8] sm:$0xff]
        %v199 = vld [vmem:[%s194] sm:$0xff]
        %201 = vset.pattern.permute.xlu0 0
        %202 = vperm.xlu0 %201, %v199
        %v203 = vpop.permute.xlu0 %202
        %v205 = vmul.f32 %v197, %v203
        %v206 = vmul.f32 %v198, %v203
        %207 = vst [vmem:[%s190] sm:$0xff] %v205
        %208 = vst [vmem:[%s190 + $0x8] sm:$0xff] %v206
        %s209 = sand.u32 %s95, 1
        %s210 = scalar_lea.sflag [#allocation4], %s209
        %s211 = sand.u32 %s95, 1
        %s212 = smul.addr %s211, 16
        %s213 = scalar_lea.vmem [#allocation5], %s212
        // Predicated region
        $region33: #{tpu_custom_call.1} parent=27 // pred_check
          %p214 = pneg %p105
        $region34: #{tpu_custom_call.1} parent=27 // pred_check_branch
          %216 = sbr.rel (%p214) target = $region36
        $region35: #{tpu_custom_call.1} parent=27 // pred_region
          %s217 = smul.u32 2, %s24
          %s219 = ssub.s32 256, 256
          %220 = vsyncadd %s210, %s219
          %s221 = smul.addr %s23, 4
          %s222 = sadd.s32 %s217, %s221
          %s223 = smul.addr %s222, 128
          %s224 = scalar_lea.hbm %s2, %s223
          %s226 = sshll.u32 %s213, 4
          %s227 = int_to_ptr.vmem [resolvable:$true] %s226
          %229 = dma.vmem_to_hbm [thread:$0]  %s227, 256, %s224, %s210
        $region36: #{tpu_custom_call.1} parent=27 // pred_fallthru
          _
      $region28: #{tpu_custom_call.1} parent=5 // pred_fallthru
        _
      %p230 = scmp.le.s32.totalorder 2, %s14
      // Predicated region
      $region37: #{tpu_custom_call.1} parent=5 // pred_check
        %p231 = pneg %p230
      $region38: #{tpu_custom_call.1} parent=5 // pred_check_branch
        %233 = sbr.rel (%p231) target = $region40
      $region39: #{tpu_custom_call.1} parent=5 // pred_region
        %s234 = ssub.s32 %s14, 2
        // Predicated region
        $region41: #{tpu_custom_call.1} parent=39 // pred_check
          %p235 = pneg %p111
        $region42: #{tpu_custom_call.1} parent=39 // pred_check_branch
          %237 = sbr.rel (%p235) target = $region44
        $region43: #{tpu_custom_call.1} parent=39 // pred_region
          %s238 = sand.u32 %s96, 1
          %s239 = scalar_lea.sflag [#allocation4], %s238
          %s240 = sand.u32 %s96, 1
          %s241 = smul.addr %s240, 16
          %s242 = scalar_lea.vmem [#allocation5], %s241
          %243 = dma.done %s239, 256
        $region44: #{tpu_custom_call.1} parent=39 // pred_fallthru
          _
      $region40: #{tpu_custom_call.1} parent=5 // pred_fallthru
        _
    $region6: #{tpu_custom_call.1} parent=1 // loop_footer
      %s18 = sadd.s32 1, %s14
    $region7: #{tpu_custom_call.1} parent=1 // loop_footer_branch
      %13 = sbr.rel target = $region3
    $region8: #{tpu_custom_call.1} parent=1 // loop_exit
      _
    %244 = vsyncpa [#allocation3], 1
    %s245 = scalar_lea.sflag [#allocation3], 1
    %246 = vsyncpa %s245, 1
    %247 = vsyncpa [#allocation4], 1
    %s248 = scalar_lea.sflag [#allocation4], 1
    %249 = vsyncpa %s248, 1

</llo_original>
